<compile_context>
chip_gen: v6e
topology: v6e:2x2x1
jax: 0.10.0
libtpu: 0.0.40
codegen_flags: <defaults>
</compile_context>

<pallas_src>
import math

import jax
import jax.numpy as jnp
from jax.experimental import pallas as pl
from jax.experimental.pallas import tpu as pltpu


def _round_up(x, m):
    return ((x + m - 1) // m) * m


def _l2_normalize(x, eps=1e-12):
    # F.normalize(x, dim=-1): x / max(||x||, eps) == x * rsqrt(max(||x||^2, eps^2))
    return x * jax.lax.rsqrt(
        jnp.maximum(jnp.sum(x * x, axis=-1, keepdims=True), eps * eps))


def _vmem_capacity_bytes():
    try:
        return int(pltpu.get_tpu_info().vmem_capacity_bytes)
    except Exception:
        return 64 * 1024 * 1024  # safe lower bound across v5e / v6e / v7x


def _arc_margin_kernel(x_ref, w_ref, o_ref):
    # x_ref: (tb, Dp)    pre-normalized features, compute dtype
    # w_ref: (k, Dp, tc) pre-normalized weight tile, compute dtype, MXU-RHS
    #                    layout (contraction dim D on sublanes, classes on lanes)
    # o_ref: (tb, tc)    output tile
    x = x_ref[...]
    k = w_ref.shape[0]
    acc = None
    for j in range(k):  # k is small & static -> unrolled; MXU matmul + VPU max
        cos = jnp.dot(x, w_ref[j], preferred_element_type=jnp.float32)
        acc = cos if acc is None else jnp.maximum(acc, cos)
    o_ref[...] = acc.astype(o_ref.dtype)


def prepare_arc_margin_weight(weight, out_features, k, *, block_c=512,
                              compute_dtype=jnp.bfloat16):
    """One-time weight prep. Cache the result across forward calls; recompute
    only when the weight parameter changes.

    weight: (out_features * k, in_features). Returns (w_prepped, meta) with
    w_prepped of shape (k, Dp, Cp): L2-normalized rows, re-laid-out for the MXU
    RHS (no in-kernel transpose), zero-padded, cast to compute_dtype.
    """
    C = out_features
    CK, D = weight.shape
    assert CK == C * k

    block_c = max(256, _round_up(block_c, 256))  # lane + 256-wide-MXU friendly
    Dp = _round_up(D, 256)
    Cp0 = _round_up(C, 256)
    tc = min(block_c, Cp0)
    Cp = _round_up(Cp0, tc)

    w = _l2_normalize(weight.astype(jnp.float32))
    # row c*k + j -> (class c, sub-center j); then (k, D, C) MXU-RHS layout.
    w = w.reshape(C, k, D).transpose(1, 2, 0)  # (k, D, C)
    if (Dp, Cp) != (D, C):
        w = jnp.pad(w, ((0, 0), (0, Dp - D), (0, Cp - C)))
    w = w.astype(compute_dtype)

    meta = dict(out_features=C, k=k, in_features=D, Dp=Dp, Cp=Cp, tc=tc,
                compute_dtype=compute_dtype)
    return w, meta


def arc_margin_product_subcenter_prepped(features, w_prepped, meta, *,
                                         block_b=512, out_dtype=jnp.float32):
    """features: (B, in_features); w_prepped/meta from prepare_arc_margin_weight."""
    B, D = features.shape
    assert D == meta["in_features"]
    C = meta["out_features"]
    k = meta["k"]
    Dp, Cp, tc = meta["Dp"], meta["Cp"], meta["tc"]
    compute_dtype = meta["compute_dtype"]

    # Feature normalization + cast hoisted out of the kernel (otherwise it is
    # recomputed once per class tile); x is DMA'd in the compute dtype.
    x = _l2_normalize(features.astype(jnp.float32)).astype(compute_dtype)

    Bp0 = _round_up(B, 8)
    tb = min(_round_up(max(block_b, 8), 8), Bp0)
    Bp = _round_up(Bp0, tb)

    # ---- fit tiles into this generation's VMEM (double-buffered operands) ----
    cbytes = jnp.dtype(compute_dtype).itemsize
    obytes = jnp.dtype(out_dtype).itemsize

    def est(tb_, tc_):
        return (2 * (tb_ * Dp * cbytes + k * Dp * tc_ * cbytes)
                + 2 * (tb_ * tc_ * obytes))

    phys = _vmem_capacity_bytes()
    budget = int(phys * 0.70)  # headroom for compiler scratch / bookkeeping
    while (est(tb, tc) > budget and tc > 256
           and (tc // 2) % 256 == 0 and Cp % (tc // 2) == 0):
        tc //= 2
    while est(tb, tc) > budget and tb > 8:
        tb = max(8, _round_up(tb // 2, 8))
        Bp = _round_up(Bp0, tb)
    # TODO(synk): for extremely wide D that still overflows VMEM, add an
    # innermost "arbitrary" D-reduction axis with a (k, tb, tc) f32 accumulator.

    # v7x has 2 TensorCores: ensure at least one parallel axis has >= 2 steps.
    if Cp // tc == 1 and Bp // tb == 1 and tc >= 512 and (tc // 2) % 256 == 0:
        tc //= 2

    if (Bp, Dp) != (B, D):
        x = jnp.pad(x, ((0, Bp - B), (0, Dp - D)))

    # Class axis outer, batch axis innermost: the (k, Dp, tc) weight tile's block
    # index is constant across the inner axis, so its DMA is skipped and the
    # whole weight streams from HBM exactly once; only the small x tiles stream.
    grid = (Cp // tc, Bp // tb)

    vmem_limit = int(min(max(int(est(tb, tc) * 1.25), 32 * 1024 * 1024),
                         int(phys * 0.9)))

    out = pl.pallas_call(
        _arc_margin_kernel,
        out_shape=jax.ShapeDtypeStruct((Bp, Cp), out_dtype),
        grid=grid,
        in_specs=[
            pl.BlockSpec((tb, Dp), lambda j, i: (i, 0)),
            pl.BlockSpec((k, Dp, tc), lambda j, i: (0, 0, j)),
        ],
        out_specs=pl.BlockSpec((tb, tc), lambda j, i: (i, j)),
        compiler_params=pltpu.CompilerParams(
            dimension_semantics=("parallel", "parallel"),
            vmem_limit_bytes=vmem_limit),
    )(x, w_prepped)

    return out[:B, :C]


def arc_margin_product_subcenter(features, weight, out_features, k, *,
                                 block_b=512, block_c=512,
                                 compute_dtype=jnp.bfloat16,
                                 out_dtype=jnp.float32):
    """Convenience one-shot API (preps the weight every call; prefer caching
    prepare_arc_margin_weight's result in real use)."""
    w_prepped, meta = prepare_arc_margin_weight(
        weight, out_features, k, block_c=block_c, compute_dtype=compute_dtype)
    return arc_margin_product_subcenter_prepped(
        features, w_prepped, meta, block_b=block_b, out_dtype=out_dtype)


def _reference(features, weight, out_features, k):
    xn = features / jnp.maximum(
        jnp.linalg.norm(features, axis=-1, keepdims=True), 1e-12)
    wn = weight / jnp.maximum(
        jnp.linalg.norm(weight, axis=-1, keepdims=True), 1e-12)
    cos_all = (xn @ wn.T).reshape(-1, out_features, k)
    return jnp.max(cos_all, axis=2)


if __name__ == "__main__":
    B = 8
    in_features = 32
    out_features = 16
    k = 3

    key = jax.random.PRNGKey(0)
    kx, kw = jax.random.split(key)

    # Deterministic init matching reset_parameters(): uniform(-stdv, stdv),
    # stdv = 1/sqrt(in_features)
    stdv = 1.0 / math.sqrt(in_features)
    weight = jax.random.uniform(
        kw, (out_features * k, in_features), dtype=jnp.float32,
        minval=-stdv, maxval=stdv)
    features = jax.random.normal(kx, (B, in_features), dtype=jnp.float32)

    ref = _reference(features, weight, out_features, k)

    # Exact path (f32 MXU operands) -> tight tolerance.
    w32, meta32 = prepare_arc_margin_weight(
        weight, out_features, k, compute_dtype=jnp.float32)
    out_f32 = arc_margin_product_subcenter_prepped(features, w32, meta32)
    out_f32 = jax.block_until_ready(out_f32)
    assert out_f32.shape == (B, out_features)
    assert jnp.allclose(out_f32, ref, atol=1e-5, rtol=1e-5)

    # Performance path: bf16 MXU operands, f32 accumulation; prepped weight is
    # computed once and reused (recompute only when the parameter changes).
    wbf, metabf = prepare_arc_margin_weight(weight, out_features, k)
    out_bf16 = arc_margin_product_subcenter_prepped(features, wbf, metabf)
    out_bf16 = jax.block_until_ready(out_bf16)
    assert out_bf16.shape == (B, out_features)
    assert jnp.allclose(out_bf16, ref, atol=2e-2, rtol=0)

    # Convenience one-shot API (matches the PyTorch module call signature).
    out2 = arc_margin_product_subcenter(features, weight, out_features, k)
    out2 = jax.block_until_ready(out2)
    assert out2.shape == (B, out_features)
    assert jnp.allclose(out2, out_bf16)

    print("KERNEL_OK")
</pallas_src>

<mosaic_0001>
module attributes {stable_mosaic.version = 11 : i64} {
  func.func @_arc_margin_kernel(%arg0: i32, %arg1: i32, %arg2: memref<8x256xf32, #tpu.memory_space<vmem>>, %arg3: memref<3x256x256xf32, #tpu.memory_space<vmem>>, %arg4: memref<8x256xf32, #tpu.memory_space<vmem>>) attributes {dimension_semantics = [#tpu.dimension_semantics<parallel>, #tpu.dimension_semantics<parallel>], iteration_bounds = array<i64: 1, 1>, scalar_prefetch = 0 : i64, scratch_operands = 0 : i64, tpu.core_type = #tpu.core_type<tc>, window_params = [{transform_indices = @transform_0, window_bounds = array<i64: 8, 256>}, {transform_indices = @transform_1, window_bounds = array<i64: 3, 256, 256>}, {transform_indices = @transform_2, window_bounds = array<i64: 8, 256>}]} {
    %c0 = arith.constant 0 : index
    %c0_0 = arith.constant 0 : index
    %0 = vector.load %arg2[%c0, %c0_0] : memref<8x256xf32, #tpu.memory_space<vmem>>, vector<8x256xf32>
    %c0_1 = arith.constant 0 : index
    %c0_2 = arith.constant 0 : index
    %c0_3 = arith.constant 0 : index
    %1 = vector.load %arg3[%c0_1, %c0_2, %c0_3] : memref<3x256x256xf32, #tpu.memory_space<vmem>>, vector<1x256x256xf32>
    %2 = vector.shape_cast %1 : vector<1x256x256xf32> to vector<256x256xf32>
    %cst = arith.constant dense<0.000000e+00> : vector<8x256xf32>
    %3 = tpu.matmul %0, %2, %cst {dimension_numbers = #tpu.dot_dimension_numbers<[1], [0], [0], [1], [0, 0, 1, 1], [], []>} : vector<8x256xf32>, vector<256x256xf32>, vector<8x256xf32> -> vector<8x256xf32>
    %c1 = arith.constant 1 : index
    %c0_4 = arith.constant 0 : index
    %c0_5 = arith.constant 0 : index
    %4 = vector.load %arg3[%c1, %c0_4, %c0_5] : memref<3x256x256xf32, #tpu.memory_space<vmem>>, vector<1x256x256xf32>
    %5 = vector.shape_cast %4 : vector<1x256x256xf32> to vector<256x256xf32>
    %cst_6 = arith.constant dense<0.000000e+00> : vector<8x256xf32>
    %6 = tpu.matmul %0, %5, %cst_6 {dimension_numbers = #tpu.dot_dimension_numbers<[1], [0], [0], [1], [0, 0, 1, 1], [], []>} : vector<8x256xf32>, vector<256x256xf32>, vector<8x256xf32> -> vector<8x256xf32>
    %7 = arith.maximumf %3, %6 : vector<8x256xf32>
    %c2 = arith.constant 2 : index
    %c0_7 = arith.constant 0 : index
    %c0_8 = arith.constant 0 : index
    %8 = vector.load %arg3[%c2, %c0_7, %c0_8] : memref<3x256x256xf32, #tpu.memory_space<vmem>>, vector<1x256x256xf32>
    %9 = vector.shape_cast %8 : vector<1x256x256xf32> to vector<256x256xf32>
    %cst_9 = arith.constant dense<0.000000e+00> : vector<8x256xf32>
    %10 = tpu.matmul %0, %9, %cst_9 {dimension_numbers = #tpu.dot_dimension_numbers<[1], [0], [0], [1], [0, 0, 1, 1], [], []>} : vector<8x256xf32>, vector<256x256xf32>, vector<8x256xf32> -> vector<8x256xf32>
    %11 = arith.maximumf %7, %10 : vector<8x256xf32>
    %c0_10 = arith.constant 0 : index
    %c0_11 = arith.constant 0 : index
    %12 = vector.load %arg4[%c0_10, %c0_11] : memref<8x256xf32, #tpu.memory_space<vmem>>, vector<8x256xf32>
    tpu.vector_store %arg4[%c0_10, %c0_11], %11 {strides = array<i32>} : memref<8x256xf32, #tpu.memory_space<vmem>>, vector<8x256xf32>,
    return
  }
  func.func @transform_0(%arg0: i32, %arg1: i32) -> (i32, i32) {
    %c0_i32 = arith.constant 0 : i32
    %c0_i32_0 = arith.constant 0 : i32
    return %arg1, %c0_i32 : i32, i32
  }
  func.func @transform_1(%arg0: i32, %arg1: i32) -> (i32, i32, i32) {
    %c0_i32 = arith.constant 0 : i32
    %c0_i32_0 = arith.constant 0 : i32
    %c0_i32_1 = arith.constant 0 : i32
    return %c0_i32, %c0_i32_0, %arg0 : i32, i32, i32
  }
  func.func @transform_2(%arg0: i32, %arg1: i32) -> (i32, i32) {
    %c0_i32 = arith.constant 0 : i32
    return %arg1, %arg0 : i32, i32
  }
}

</mosaic_0001>

<llo_original>
// kernel: tpu_custom_call.1
$region0: #{tpu_custom_call.1}
  #allocation0 [shape = 'u32[]', space=smem, size = 0x4, offset = 0x4, fixed_abs, tag = 'smem constant byte address 0x4 - core index']
  #allocation1 [shape = 'u32[144,128]{1,0:T(1,128)}', space=vmem, size = 0x12000, scoped, tag = 'internal scratch']
  %s0 = inlined_call_operand.hbm [shape: f32[8,256], index: 0, kind: input, shape index: {}]
  %s1 = inlined_call_operand.hbm [shape: f32[3,256,256], index: 1, kind: input, shape index: {}]
  %s2 = inlined_call_operand.hbm [shape: f32[8,256], index: 2, kind: output, shape index: {}]
  %s3 = sld [smem:[#allocation0]]
  $region26: #{tpu_custom_call.1} parent=0
    _
  %s5 = ssub.s32 1, %s3
  %s6 = scalar_select 0, %s5, %s3
  $region1: #{tpu_custom_call.1} parent=0
    #allocation2 [shape = 'u8[8192]{0}', space=vmem, size = 0x2000, scoped, tag = 'input window, operand 0, single buffered']
    #allocation3 [shape = 's32[1]{0}', space=sflag, size = 0x4, scoped, tag = 'scoped memory for tpu_custom_call.1']
    #allocation4 [shape = 's32[1]{0}', space=sflag, size = 0x4, scoped, tag = 'scoped memory for tpu_custom_call.1']
    #allocation5 [shape = 'u8[786432]{0}', space=vmem, size = 0xc0000, scoped, tag = 'input window, operand 1, single buffered']
    #allocation6 [shape = 's32[1]{0}', space=sflag, size = 0x4, scoped, tag = 'scoped memory for tpu_custom_call.1']
    #allocation7 [shape = 'u8[8192]{0}', space=vmem, size = 0x2000, scoped, tag = 'output window, operand 0, single buffered']
    %7 = vsyncpa [#allocation3], 0
    %8 = vsyncpa [#allocation6], 0
    %9 = vsyncpa [#allocation4], 0
    // Predicated region
    $region2: #{tpu_custom_call.1} parent=1 // pred_check
      _
    $region3: #{tpu_custom_call.1} parent=1 // pred_check_branch
      %11 = sbr.rel (0) target = $region5
    $region4: #{tpu_custom_call.1} parent=1 // pred_region
      %s13 = ssub.s32 256, 256
      %14 = vsyncadd [#allocation3], %s13
      %s16 = sshll.u32 [#allocation2], 4
      %s17 = int_to_ptr.vmem [resolvable:$true] %s16
      %19 = dma.hbm_to_vmem [thread:$0]  %s0, 256, %s17, [#allocation3]
    $region5: #{tpu_custom_call.1} parent=1 // pred_fallthru
      _
    // Predicated region
    $region6: #{tpu_custom_call.1} parent=1 // pred_check
      _
    $region7: #{tpu_custom_call.1} parent=1 // pred_check_branch
      %21 = sbr.rel (0) target = $region9
    $region8: #{tpu_custom_call.1} parent=1 // pred_region
      %s23 = ssub.s32 24576, 24576
      %24 = vsyncadd [#allocation6], %s23
      %s25 = sshll.u32 [#allocation5], 4
      %s26 = int_to_ptr.vmem [resolvable:$true] %s25
      %31 = dma.hbm_to_vmem [thread:$0]  %s1, 24576, %s26, [#allocation6], 256, 256, 16
    $region9: #{tpu_custom_call.1} parent=1 // pred_fallthru
      _
    // Predicated region
    $region10: #{tpu_custom_call.1} parent=1 // pred_check
      _
    $region11: #{tpu_custom_call.1} parent=1 // pred_check_branch
      %33 = sbr.rel (0) target = $region13
    $region12: #{tpu_custom_call.1} parent=1 // pred_region
      %34 = dma.done [#allocation3], 256
    $region13: #{tpu_custom_call.1} parent=1 // pred_fallthru
      _
    // Predicated region
    $region14: #{tpu_custom_call.1} parent=1 // pred_check
      _
    $region15: #{tpu_custom_call.1} parent=1 // pred_check_branch
      %36 = sbr.rel (0) target = $region17
    $region16: #{tpu_custom_call.1} parent=1 // pred_region
      %37 = dma.done [#allocation6], 24576
    $region17: #{tpu_custom_call.1} parent=1 // pred_fallthru
      _
    %v38 = vld [vmem:[#allocation2] sm:$0xff]
    %v39 = vld [vmem:[#allocation2 + $0x8] sm:$0xff]
    %v40 = vld [vmem:[#allocation5] sm:$0xff]
    %v41 = vld [vmem:[#allocation5 + $0x8] sm:$0xff]
    %v42 = vld [vmem:[#allocation5 + $0x10] sm:$0xff]
    %v43 = vld [vmem:[#allocation5 + $0x18] sm:$0xff]
    %v44 = vld [vmem:[#allocation5 + $0x20] sm:$0xff]
    %v45 = vld [vmem:[#allocation5 + $0x28] sm:$0xff]
    %v46 = vld [vmem:[#allocation5 + $0x30] sm:$0xff]
    %v47 = vld [vmem:[#allocation5 + $0x38] sm:$0xff]
    %v48 = vld [vmem:[#allocation5 + $0x40] sm:$0xff]
    %v49 = vld [vmem:[#allocation5 + $0x48] sm:$0xff]
    %v50 = vld [vmem:[#allocation5 + $0x50] sm:$0xff]
    %v51 = vld [vmem:[#allocation5 + $0x58] sm:$0xff]
    %v52 = vld [vmem:[#allocation5 + $0x60] sm:$0xff]
    %v53 = vld [vmem:[#allocation5 + $0x68] sm:$0xff]
    %v54 = vld [vmem:[#allocation5 + $0x70] sm:$0xff]
    %v55 = vld [vmem:[#allocation5 + $0x78] sm:$0xff]
    %v56 = vld [vmem:[#allocation5 + $0x80] sm:$0xff]
    %v57 = vld [vmem:[#allocation5 + $0x88] sm:$0xff]
    %v58 = vld [vmem:[#allocation5 + $0x90] sm:$0xff]
    %v59 = vld [vmem:[#allocation5 + $0x98] sm:$0xff]
    %v60 = vld [vmem:[#allocation5 + $0xa0] sm:$0xff]
    %v61 = vld [vmem:[#allocation5 + $0xa8] sm:$0xff]
    %v62 = vld [vmem:[#allocation5 + $0xb0] sm:$0xff]
    %v63 = vld [vmem:[#allocation5 + $0xb8] sm:$0xff]
    %v64 = vld [vmem:[#allocation5 + $0xc0] sm:$0xff]
    %v65 = vld [vmem:[#allocation5 + $0xc8] sm:$0xff]
    %v66 = vld [vmem:[#allocation5 + $0xd0] sm:$0xff]
    %v67 = vld [vmem:[#allocation5 + $0xd8] sm:$0xff]
    %v68 = vld [vmem:[#allocation5 + $0xe0] sm:$0xff]
    %v69 = vld [vmem:[#allocation5 + $0xe8] sm:$0xff]
    %v70 = vld [vmem:[#allocation5 + $0xf0] sm:$0xff]
    %v71 = vld [vmem:[#allocation5 + $0xf8] sm:$0xff]
    %v72 = vld [vmem:[#allocation5 + $0x100] sm:$0xff]
    %v73 = vld [vmem:[#allocation5 + $0x108] sm:$0xff]
    %v74 = vld [vmem:[#allocation5 + $0x110] sm:$0xff]
    %v75 = vld [vmem:[#allocation5 + $0x118] sm:$0xff]
    %v76 = vld [vmem:[#allocation5 + $0x120] sm:$0xff]
    %v77 = vld [vmem:[#allocation5 + $0x128] sm:$0xff]
    %v78 = vld [vmem:[#allocation5 + $0x130] sm:$0xff]
    %v79 = vld [vmem:[#allocation5 + $0x138] sm:$0xff]
    %v80 = vld [vmem:[#allocation5 + $0x140] sm:$0xff]
    %v81 = vld [vmem:[#allocation5 + $0x148] sm:$0xff]
    %v82 = vld [vmem:[#allocation5 + $0x150] sm:$0xff]
    %v83 = vld [vmem:[#allocation5 + $0x158] sm:$0xff]
    %v84 = vld [vmem:[#allocation5 + $0x160] sm:$0xff]
    %v85 = vld [vmem:[#allocation5 + $0x168] sm:$0xff]
    %v86 = vld [vmem:[#allocation5 + $0x170] sm:$0xff]
    %v87 = vld [vmem:[#allocation5 + $0x178] sm:$0xff]
    %v88 = vld [vmem:[#allocation5 + $0x180] sm:$0xff]
    %v89 = vld [vmem:[#allocation5 + $0x188] sm:$0xff]
    %v90 = vld [vmem:[#allocation5 + $0x190] sm:$0xff]
    %v91 = vld [vmem:[#allocation5 + $0x198] sm:$0xff]
    %v92 = vld [vmem:[#allocation5 + $0x1a0] sm:$0xff]
    %v93 = vld [vmem:[#allocation5 + $0x1a8] sm:$0xff]
    %v94 = vld [vmem:[#allocation5 + $0x1b0] sm:$0xff]
    %v95 = vld [vmem:[#allocation5 + $0x1b8] sm:$0xff]
    %v96 = vld [vmem:[#allocation5 + $0x1c0] sm:$0xff]
    %v97 = vld [vmem:[#allocation5 + $0x1c8] sm:$0xff]
    %v98 = vld [vmem:[#allocation5 + $0x1d0] sm:$0xff]
    %v99 = vld [vmem:[#allocation5 + $0x1d8] sm:$0xff]
    %v100 = vld [vmem:[#allocation5 + $0x1e0] sm:$0xff]
    %v101 = vld [vmem:[#allocation5 + $0x1e8] sm:$0xff]
    %v102 = vld [vmem:[#allocation5 + $0x1f0] sm:$0xff]
    %v103 = vld [vmem:[#allocation5 + $0x1f8] sm:$0xff]
    %104 = vmatprep.subr.mxu0 %v71
    %105 = vmatpush1.msra.mxu0 %v70
    %106 = vmatprep.subr.mxu0 %v69
    %107 = vmatpush1.msra.mxu0 %v68
    %108 = vmatprep.subr.mxu0 %v67
    %109 = vmatpush1.msra.mxu0 %v66
    %110 = vmatprep.subr.mxu0 %v65
    %111 = vmatpush1.msra.mxu0 %v64
    %112 = vmatprep.subr.mxu0 %v63
    %113 = vmatpush1.msra.mxu0 %v62
    %114 = vmatprep.subr.mxu0 %v61
    %115 = vmatpush1.msra.mxu0 %v60
    %116 = vmatprep.subr.mxu0 %v59
    %117 = vmatpush1.msra.mxu0 %v58
    %118 = vmatprep.subr.mxu0 %v57
    %119 = vmatpush1.msra.mxu0 %v56
    %120 = vmatprep.subr.mxu0 %v55
    %121 = vmatpush1.msra.mxu0 %v54
    %122 = vmatprep.subr.mxu0 %v53
    %123 = vmatpush1.msra.mxu0 %v52
    %124 = vmatprep.subr.mxu0 %v51
    %125 = vmatpush1.msra.mxu0 %v50
    %126 = vmatprep.subr.mxu0 %v49
    %127 = vmatpush1.msra.mxu0 %v48
    %128 = vmatprep.subr.mxu0 %v47
    %129 = vmatpush1.msra.mxu0 %v46
    %130 = vmatprep.subr.mxu0 %v45
    %131 = vmatpush1.msra.mxu0 %v44
    %132 = vmatprep.subr.mxu0 %v43
    %133 = vmatpush1.msra.mxu0 %v42
    %134 = vmatprep.subr.mxu0 %v41
    %135 = vmatpush1.msra.mxu0 %v40
    %136 = vmatprep.subr.mxu0 %v103
    %137 = vmatpush2.msra.mxu0 %v102
    %138 = vmatprep.subr.mxu0 %v101
    %139 = vmatpush2.msra.mxu0 %v100
    %140 = vmatprep.subr.mxu0 %v99
    %141 = vmatpush2.msra.mxu0 %v98
    %142 = vmatprep.subr.mxu0 %v97
    %143 = vmatpush2.msra.mxu0 %v96
    %144 = vmatprep.subr.mxu0 %v95
    %145 = vmatpush2.msra.mxu0 %v94
    %146 = vmatprep.subr.mxu0 %v93
    %147 = vmatpush2.msra.mxu0 %v92
    %148 = vmatprep.subr.mxu0 %v91
    %149 = vmatpush2.msra.mxu0 %v90
    %150 = vmatprep.subr.mxu0 %v89
    %151 = vmatpush2.msra.mxu0 %v88
    %152 = vmatprep.subr.mxu0 %v87
    %153 = vmatpush2.msra.mxu0 %v86
    %154 = vmatprep.subr.mxu0 %v85
    %155 = vmatpush2.msra.mxu0 %v84
    %156 = vmatprep.subr.mxu0 %v83
    %157 = vmatpush2.msra.mxu0 %v82
    %158 = vmatprep.subr.mxu0 %v81
    %159 = vmatpush2.msra.mxu0 %v80
    %160 = vmatprep.subr.mxu0 %v79
    %161 = vmatpush2.msra.mxu0 %v78
    %162 = vmatprep.subr.mxu0 %v77
    %163 = vmatpush2.msra.mxu0 %v76
    %164 = vmatprep.subr.mxu0 %v75
    %165 = vmatpush2.msra.mxu0 %v74
    %166 = vmatprep.subr.mxu0 %v73
    %167 = vmatpush2.msra.mxu0 %v72
    %168 = vmatprep.mubr.f32.mxu0 %v39
    %169 = vmatmul.mubr.f32.gmra.mxu0 %v38
    %v170 = vpop.f32.mrf.mxu0
    %v171 = vadd.f32 0.0, %v170
    %v172 = vpop.f32.mrf.mxu0
    %v173 = vadd.f32 0.0, %v172
    %174 = vdwg.mxu0
    %s175 = scalar_lea.vmem [#allocation5], 512
    %v176 = vld [vmem:[%s175] sm:$0xff]
    %v177 = vld [vmem:[%s175 + $0x8] sm:$0xff]
    %v178 = vld [vmem:[%s175 + $0x10] sm:$0xff]
    %v179 = vld [vmem:[%s175 + $0x18] sm:$0xff]
    %v180 = vld [vmem:[%s175 + $0x20] sm:$0xff]
    %v181 = vld [vmem:[%s175 + $0x28] sm:$0xff]
    %v182 = vld [vmem:[%s175 + $0x30] sm:$0xff]
    %v183 = vld [vmem:[%s175 + $0x38] sm:$0xff]
    %v184 = vld [vmem:[%s175 + $0x40] sm:$0xff]
    %v185 = vld [vmem:[%s175 + $0x48] sm:$0xff]
    %v186 = vld [vmem:[%s175 + $0x50] sm:$0xff]
    %v187 = vld [vmem:[%s175 + $0x58] sm:$0xff]
    %v188 = vld [vmem:[%s175 + $0x60] sm:$0xff]
    %v189 = vld [vmem:[%s175 + $0x68] sm:$0xff]
    %v190 = vld [vmem:[%s175 + $0x70] sm:$0xff]
    %v191 = vld [vmem:[%s175 + $0x78] sm:$0xff]
    %v192 = vld [vmem:[%s175 + $0x80] sm:$0xff]
    %v193 = vld [vmem:[%s175 + $0x88] sm:$0xff]
    %v194 = vld [vmem:[%s175 + $0x90] sm:$0xff]
    %v195 = vld [vmem:[%s175 + $0x98] sm:$0xff]
    %v196 = vld [vmem:[%s175 + $0xa0] sm:$0xff]
    %v197 = vld [vmem:[%s175 + $0xa8] sm:$0xff]
    %v198 = vld [vmem:[%s175 + $0xb0] sm:$0xff]
    %v199 = vld [vmem:[%s175 + $0xb8] sm:$0xff]
    %v200 = vld [vmem:[%s175 + $0xc0] sm:$0xff]
    %v201 = vld [vmem:[%s175 + $0xc8] sm:$0xff]
    %v202 = vld [vmem:[%s175 + $0xd0] sm:$0xff]
    %v203 = vld [vmem:[%s175 + $0xd8] sm:$0xff]
    %v204 = vld [vmem:[%s175 + $0xe0] sm:$0xff]
    %v205 = vld [vmem:[%s175 + $0xe8] sm:$0xff]
    %v206 = vld [vmem:[%s175 + $0xf0] sm:$0xff]
    %v207 = vld [vmem:[%s175 + $0xf8] sm:$0xff]
    %v208 = vld [vmem:[%s175 + $0x100] sm:$0xff]
    %v209 = vld [vmem:[%s175 + $0x108] sm:$0xff]
    %v210 = vld [vmem:[%s175 + $0x110] sm:$0xff]
    %v211 = vld [vmem:[%s175 + $0x118] sm:$0xff]
    %v212 = vld [vmem:[%s175 + $0x120] sm:$0xff]
    %v213 = vld [vmem:[%s175 + $0x128] sm:$0xff]
    %v214 = vld [vmem:[%s175 + $0x130] sm:$0xff]
    %v215 = vld [vmem:[%s175 + $0x138] sm:$0xff]
    %v216 = vld [vmem:[%s175 + $0x140] sm:$0xff]
    %v217 = vld [vmem:[%s175 + $0x148] sm:$0xff]
    %v218 = vld [vmem:[%s175 + $0x150] sm:$0xff]
    %v219 = vld [vmem:[%s175 + $0x158] sm:$0xff]
    %v220 = vld [vmem:[%s175 + $0x160] sm:$0xff]
    %v221 = vld [vmem:[%s175 + $0x168] sm:$0xff]
    %v222 = vld [vmem:[%s175 + $0x170] sm:$0xff]
    %v223 = vld [vmem:[%s175 + $0x178] sm:$0xff]
    %v224 = vld [vmem:[%s175 + $0x180] sm:$0xff]
    %v225 = vld [vmem:[%s175 + $0x188] sm:$0xff]
    %v226 = vld [vmem:[%s175 + $0x190] sm:$0xff]
    %v227 = vld [vmem:[%s175 + $0x198] sm:$0xff]
    %v228 = vld [vmem:[%s175 + $0x1a0] sm:$0xff]
    %v229 = vld [vmem:[%s175 + $0x1a8] sm:$0xff]
    %v230 = vld [vmem:[%s175 + $0x1b0] sm:$0xff]
    %v231 = vld [vmem:[%s175 + $0x1b8] sm:$0xff]
    %v232 = vld [vmem:[%s175 + $0x1c0] sm:$0xff]
    %v233 = vld [vmem:[%s175 + $0x1c8] sm:$0xff]
    %v234 = vld [vmem:[%s175 + $0x1d0] sm:$0xff]
    %v235 = vld [vmem:[%s175 + $0x1d8] sm:$0xff]
    %v236 = vld [vmem:[%s175 + $0x1e0] sm:$0xff]
    %v237 = vld [vmem:[%s175 + $0x1e8] sm:$0xff]
    %v238 = vld [vmem:[%s175 + $0x1f0] sm:$0xff]
    %v239 = vld [vmem:[%s175 + $0x1f8] sm:$0xff]
    %240 = vmatprep.subr.mxu0 %v207
    %241 = vmatpush1.msra.mxu0 %v206
    %242 = vmatprep.subr.mxu0 %v205
    %243 = vmatpush1.msra.mxu0 %v204
    %244 = vmatprep.subr.mxu0 %v203
    %245 = vmatpush1.msra.mxu0 %v202
    %246 = vmatprep.subr.mxu0 %v201
    %247 = vmatpush1.msra.mxu0 %v200
    %248 = vmatprep.subr.mxu0 %v199
    %249 = vmatpush1.msra.mxu0 %v198
    %250 = vmatprep.subr.mxu0 %v197
    %251 = vmatpush1.msra.mxu0 %v196
    %252 = vmatprep.subr.mxu0 %v195
    %253 = vmatpush1.msra.mxu0 %v194
    %254 = vmatprep.subr.mxu0 %v193
    %255 = vmatpush1.msra.mxu0 %v192
    %256 = vmatprep.subr.mxu0 %v191
    %257 = vmatpush1.msra.mxu0 %v190
    %258 = vmatprep.subr.mxu0 %v189
    %259 = vmatpush1.msra.mxu0 %v188
    %260 = vmatprep.subr.mxu0 %v187
    %261 = vmatpush1.msra.mxu0 %v186
    %262 = vmatprep.subr.mxu0 %v185
    %263 = vmatpush1.msra.mxu0 %v184
    %264 = vmatprep.subr.mxu0 %v183
    %265 = vmatpush1.msra.mxu0 %v182
    %266 = vmatprep.subr.mxu0 %v181
    %267 = vmatpush1.msra.mxu0 %v180
    %268 = vmatprep.subr.mxu0 %v179
    %269 = vmatpush1.msra.mxu0 %v178
    %270 = vmatprep.subr.mxu0 %v177
    %271 = vmatpush1.msra.mxu0 %v176
    %272 = vmatprep.subr.mxu0 %v239
    %273 = vmatpush2.msra.mxu0 %v238
    %274 = vmatprep.subr.mxu0 %v237
    %275 = vmatpush2.msra.mxu0 %v236
    %276 = vmatprep.subr.mxu0 %v235
    %277 = vmatpush2.msra.mxu0 %v234
    %278 = vmatprep.subr.mxu0 %v233
    %279 = vmatpush2.msra.mxu0 %v232
    %280 = vmatprep.subr.mxu0 %v231
    %281 = vmatpush2.msra.mxu0 %v230
    %282 = vmatprep.subr.mxu0 %v229
    %283 = vmatpush2.msra.mxu0 %v228
    %284 = vmatprep.subr.mxu0 %v227
    %285 = vmatpush2.msra.mxu0 %v226
    %286 = vmatprep.subr.mxu0 %v225
    %287 = vmatpush2.msra.mxu0 %v224
    %288 = vmatprep.subr.mxu0 %v223
    %289 = vmatpush2.msra.mxu0 %v222
    %290 = vmatprep.subr.mxu0 %v221
    %291 = vmatpush2.msra.mxu0 %v220
    %292 = vmatprep.subr.mxu0 %v219
    %293 = vmatpush2.msra.mxu0 %v218
    %294 = vmatprep.subr.mxu0 %v217
    %295 = vmatpush2.msra.mxu0 %v216
    %296 = vmatprep.subr.mxu0 %v215
    %297 = vmatpush2.msra.mxu0 %v214
    %298 = vmatprep.subr.mxu0 %v213
    %299 = vmatpush2.msra.mxu0 %v212
    %300 = vmatprep.subr.mxu0 %v211
    %301 = vmatpush2.msra.mxu0 %v210
    %302 = vmatprep.subr.mxu0 %v209
    %303 = vmatpush2.msra.mxu0 %v208
    %304 = vmatprep.mubr.f32.mxu0 %v39
    %305 = vmatmul.mubr.f32.gmra.mxu0 %v38
    %v306 = vpop.f32.mrf.mxu0
    %v307 = vadd.f32 0.0, %v306
    %v308 = vpop.f32.mrf.mxu0
    %v309 = vadd.f32 0.0, %v308
    %310 = vdwg.mxu0
    %v311 = vmax.f32 %v171, %v307
    %v312 = vmax.f32 %v173, %v309
    %s313 = scalar_lea.vmem [#allocation5], 1024
    %v314 = vld [vmem:[%s313] sm:$0xff]
    %v315 = vld [vmem:[%s313 + $0x8] sm:$0xff]
    %v316 = vld [vmem:[%s313 + $0x10] sm:$0xff]
    %v317 = vld [vmem:[%s313 + $0x18] sm:$0xff]
    %v318 = vld [vmem:[%s313 + $0x20] sm:$0xff]
    %v319 = vld [vmem:[%s313 + $0x28] sm:$0xff]
    %v320 = vld [vmem:[%s313 + $0x30] sm:$0xff]
    %v321 = vld [vmem:[%s313 + $0x38] sm:$0xff]
    %v322 = vld [vmem:[%s313 + $0x40] sm:$0xff]
    %v323 = vld [vmem:[%s313 + $0x48] sm:$0xff]
    %v324 = vld [vmem:[%s313 + $0x50] sm:$0xff]
    %v325 = vld [vmem:[%s313 + $0x58] sm:$0xff]
    %v326 = vld [vmem:[%s313 + $0x60] sm:$0xff]
    %v327 = vld [vmem:[%s313 + $0x68] sm:$0xff]
    %v328 = vld [vmem:[%s313 + $0x70] sm:$0xff]
    %v329 = vld [vmem:[%s313 + $0x78] sm:$0xff]
    %v330 = vld [vmem:[%s313 + $0x80] sm:$0xff]
    %v331 = vld [vmem:[%s313 + $0x88] sm:$0xff]
    %v332 = vld [vmem:[%s313 + $0x90] sm:$0xff]
    %v333 = vld [vmem:[%s313 + $0x98] sm:$0xff]
    %v334 = vld [vmem:[%s313 + $0xa0] sm:$0xff]
    %v335 = vld [vmem:[%s313 + $0xa8] sm:$0xff]
    %v336 = vld [vmem:[%s313 + $0xb0] sm:$0xff]
    %v337 = vld [vmem:[%s313 + $0xb8] sm:$0xff]
    %v338 = vld [vmem:[%s313 + $0xc0] sm:$0xff]
    %v339 = vld [vmem:[%s313 + $0xc8] sm:$0xff]
    %v340 = vld [vmem:[%s313 + $0xd0] sm:$0xff]
    %v341 = vld [vmem:[%s313 + $0xd8] sm:$0xff]
    %v342 = vld [vmem:[%s313 + $0xe0] sm:$0xff]
    %v343 = vld [vmem:[%s313 + $0xe8] sm:$0xff]
    %v344 = vld [vmem:[%s313 + $0xf0] sm:$0xff]
    %v345 = vld [vmem:[%s313 + $0xf8] sm:$0xff]
    %v346 = vld [vmem:[%s313 + $0x100] sm:$0xff]
    %v347 = vld [vmem:[%s313 + $0x108] sm:$0xff]
    %v348 = vld [vmem:[%s313 + $0x110] sm:$0xff]
    %v349 = vld [vmem:[%s313 + $0x118] sm:$0xff]
    %v350 = vld [vmem:[%s313 + $0x120] sm:$0xff]
    %v351 = vld [vmem:[%s313 + $0x128] sm:$0xff]
    %v352 = vld [vmem:[%s313 + $0x130] sm:$0xff]
    %v353 = vld [vmem:[%s313 + $0x138] sm:$0xff]
    %v354 = vld [vmem:[%s313 + $0x140] sm:$0xff]
    %v355 = vld [vmem:[%s313 + $0x148] sm:$0xff]
    %v356 = vld [vmem:[%s313 + $0x150] sm:$0xff]
    %v357 = vld [vmem:[%s313 + $0x158] sm:$0xff]
    %v358 = vld [vmem:[%s313 + $0x160] sm:$0xff]
    %v359 = vld [vmem:[%s313 + $0x168] sm:$0xff]
    %v360 = vld [vmem:[%s313 + $0x170] sm:$0xff]
    %v361 = vld [vmem:[%s313 + $0x178] sm:$0xff]
    %v362 = vld [vmem:[%s313 + $0x180] sm:$0xff]
    %v363 = vld [vmem:[%s313 + $0x188] sm:$0xff]
    %v364 = vld [vmem:[%s313 + $0x190] sm:$0xff]
    %v365 = vld [vmem:[%s313 + $0x198] sm:$0xff]
    %v366 = vld [vmem:[%s313 + $0x1a0] sm:$0xff]
    %v367 = vld [vmem:[%s313 + $0x1a8] sm:$0xff]
    %v368 = vld [vmem:[%s313 + $0x1b0] sm:$0xff]
    %v369 = vld [vmem:[%s313 + $0x1b8] sm:$0xff]
    %v370 = vld [vmem:[%s313 + $0x1c0] sm:$0xff]
    %v371 = vld [vmem:[%s313 + $0x1c8] sm:$0xff]
    %v372 = vld [vmem:[%s313 + $0x1d0] sm:$0xff]
    %v373 = vld [vmem:[%s313 + $0x1d8] sm:$0xff]
    %v374 = vld [vmem:[%s313 + $0x1e0] sm:$0xff]
    %v375 = vld [vmem:[%s313 + $0x1e8] sm:$0xff]
    %v376 = vld [vmem:[%s313 + $0x1f0] sm:$0xff]
    %v377 = vld [vmem:[%s313 + $0x1f8] sm:$0xff]
    %378 = vmatprep.subr.mxu0 %v345
    %379 = vmatpush1.msra.mxu0 %v344
    %380 = vmatprep.subr.mxu0 %v343
    %381 = vmatpush1.msra.mxu0 %v342
    %382 = vmatprep.subr.mxu0 %v341
    %383 = vmatpush1.msra.mxu0 %v340
    %384 = vmatprep.subr.mxu0 %v339
    %385 = vmatpush1.msra.mxu0 %v338
    %386 = vmatprep.subr.mxu0 %v337
    %387 = vmatpush1.msra.mxu0 %v336
    %388 = vmatprep.subr.mxu0 %v335
    %389 = vmatpush1.msra.mxu0 %v334
    %390 = vmatprep.subr.mxu0 %v333
    %391 = vmatpush1.msra.mxu0 %v332
    %392 = vmatprep.subr.mxu0 %v331
    %393 = vmatpush1.msra.mxu0 %v330
    %394 = vmatprep.subr.mxu0 %v329
    %395 = vmatpush1.msra.mxu0 %v328
    %396 = vmatprep.subr.mxu0 %v327
    %397 = vmatpush1.msra.mxu0 %v326
    %398 = vmatprep.subr.mxu0 %v325
    %399 = vmatpush1.msra.mxu0 %v324
    %400 = vmatprep.subr.mxu0 %v323
    %401 = vmatpush1.msra.mxu0 %v322
    %402 = vmatprep.subr.mxu0 %v321
    %403 = vmatpush1.msra.mxu0 %v320
    %404 = vmatprep.subr.mxu0 %v319
    %405 = vmatpush1.msra.mxu0 %v318
    %406 = vmatprep.subr.mxu0 %v317
    %407 = vmatpush1.msra.mxu0 %v316
    %408 = vmatprep.subr.mxu0 %v315
    %409 = vmatpush1.msra.mxu0 %v314
    %410 = vmatprep.subr.mxu0 %v377
    %411 = vmatpush2.msra.mxu0 %v376
    %412 = vmatprep.subr.mxu0 %v375
    %413 = vmatpush2.msra.mxu0 %v374
    %414 = vmatprep.subr.mxu0 %v373
    %415 = vmatpush2.msra.mxu0 %v372
    %416 = vmatprep.subr.mxu0 %v371
    %417 = vmatpush2.msra.mxu0 %v370
    %418 = vmatprep.subr.mxu0 %v369
    %419 = vmatpush2.msra.mxu0 %v368
    %420 = vmatprep.subr.mxu0 %v367
    %421 = vmatpush2.msra.mxu0 %v366
    %422 = vmatprep.subr.mxu0 %v365
    %423 = vmatpush2.msra.mxu0 %v364
    %424 = vmatprep.subr.mxu0 %v363
    %425 = vmatpush2.msra.mxu0 %v362
    %426 = vmatprep.subr.mxu0 %v361
    %427 = vmatpush2.msra.mxu0 %v360
    %428 = vmatprep.subr.mxu0 %v359
    %429 = vmatpush2.msra.mxu0 %v358
    %430 = vmatprep.subr.mxu0 %v357
    %431 = vmatpush2.msra.mxu0 %v356
    %432 = vmatprep.subr.mxu0 %v355
    %433 = vmatpush2.msra.mxu0 %v354
    %434 = vmatprep.subr.mxu0 %v353
    %435 = vmatpush2.msra.mxu0 %v352
    %436 = vmatprep.subr.mxu0 %v351
    %437 = vmatpush2.msra.mxu0 %v350
    %438 = vmatprep.subr.mxu0 %v349
    %439 = vmatpush2.msra.mxu0 %v348
    %440 = vmatprep.subr.mxu0 %v347
    %441 = vmatpush2.msra.mxu0 %v346
    %442 = vmatprep.mubr.f32.mxu0 %v39
    %443 = vmatmul.mubr.f32.gmra.mxu0 %v38
    %v444 = vpop.f32.mrf.mxu0
    %v445 = vadd.f32 0.0, %v444
    %v446 = vpop.f32.mrf.mxu0
    %v447 = vadd.f32 0.0, %v446
    %448 = vdwg.mxu0
    %v449 = vmax.f32 %v311, %v445
    %v450 = vmax.f32 %v312, %v447
    %451 = vst [vmem:[#allocation7] sm:$0xff] %v449
    %452 = vst [vmem:[#allocation7 + $0x8] sm:$0xff] %v450
    // Predicated region
    $region18: #{tpu_custom_call.1} parent=1 // pred_check
      _
    $region19: #{tpu_custom_call.1} parent=1 // pred_check_branch
      %454 = sbr.rel (0) target = $region21
    $region20: #{tpu_custom_call.1} parent=1 // pred_region
      %s456 = ssub.s32 256, 256
      %457 = vsyncadd [#allocation4], %s456
      %s459 = sshll.u32 [#allocation7], 4
      %s460 = int_to_ptr.vmem [resolvable:$true] %s459
      %462 = dma.vmem_to_hbm [thread:$0]  %s460, 256, %s2, [#allocation4]
    $region21: #{tpu_custom_call.1} parent=1 // pred_fallthru
      _
    // Predicated region
    $region22: #{tpu_custom_call.1} parent=1 // pred_check
      _
    $region23: #{tpu_custom_call.1} parent=1 // pred_check_branch
      %464 = sbr.rel (0) target = $region25
    $region24: #{tpu_custom_call.1} parent=1 // pred_region
      %465 = dma.done [#allocation4], 256
    $region25: #{tpu_custom_call.1} parent=1 // pred_fallthru
      _
    %466 = vsyncpa [#allocation3], 1
    %467 = vsyncpa [#allocation6], 1
    %468 = vsyncpa [#allocation4], 1

</llo_original>
